<compile_context>
chip_gen: v5e
topology: v5e:2x2
jax: 0.10.0
libtpu: 0.0.40
codegen_flags: <defaults>
</compile_context>

<pallas_src>
import jax
import jax.numpy as jnp
from jax.experimental import pallas as pl
from jax.experimental.pallas import tpu as pltpu

# Problem sizes (small, consistent with the module: in_channels=4, out_channels=8)
N, CIN, COUT, H, W = 2, 4, 8, 16, 16
KH = KW = 3
PAD = 1
STRIDE = 1            # module default
EPS = 1e-5            # nn.BatchNorm2d default eps
NEG_SLOPE = 0.01      # nn.LeakyReLU default negative_slope

# Derived layout constants
NH = N * H                      # 32  kernel rows
WP = W + 2 * PAD                # 18  padded row width
ROWK = WP * CIN                 # 72  one flattened padded input row
KTOT = KH * ROWK                # 216 GEMM contraction dim
LANES = W * COUT                # 128 lane-dense output width (exactly one vreg row)
NHW = N * H * W                 # 512 BatchNorm population size


def convblock_kernel(lhs_ref, m_ref, sel_ref, gamma_ref, beta_ref, o_ref):
    """lhs_ref:(NH, KTOT) bf16   m_ref:(KTOT, LANES) bf16   sel_ref:(COUT, LANES) f32
    gamma_ref/beta_ref:(COUT, 1) f32   o_ref:(NH, LANES) f32

    Lane l of a row (n, h) holds output position (w, cout) with cout = l % COUT."""
    # --- Conv2d: single lane-dense GEMM on the MXU, bf16 in / f32 accumulate ---
    y = jnp.dot(lhs_ref[...], m_ref[...],
                preferred_element_type=jnp.float32)            # (NH, LANES) f32

    # --- BatchNorm2d (training-mode batch stats), fused single-pass form ---
    sel = sel_ref[...]                                          # one-hot channel map
    lane_sum = jnp.sum(y, axis=0, keepdims=True)                # (1, LANES)
    lane_sumsq = jnp.sum(y * y, axis=0, keepdims=True)          # (1, LANES)
    ch_sum = jnp.sum(sel * lane_sum, axis=1, keepdims=True)     # (COUT, 1)
    ch_sumsq = jnp.sum(sel * lane_sumsq, axis=1, keepdims=True) # (COUT, 1)

    inv_n = 1.0 / NHW
    mean = ch_sum * inv_n
    # E[y^2] - mean^2: y is (bias-free) conv output, ~zero-mean, so no cancellation.
    var = ch_sumsq * inv_n - mean * mean
    scale = gamma_ref[...] * jax.lax.rsqrt(var + EPS)           # (COUT, 1)
    shift = beta_ref[...] - mean * scale                        # (COUT, 1)

    # Broadcast per-channel scale/shift back onto the (w*COUT) lane layout.
    scale_l = jnp.sum(sel * scale, axis=0, keepdims=True)       # (1, LANES)
    shift_l = jnp.sum(sel * shift, axis=0, keepdims=True)       # (1, LANES)

    # --- single FMA pass + LeakyReLU, stored lane-dense ---
    z = y * scale_l + shift_l
    o_ref[...] = jnp.where(z >= 0, z, NEG_SLOPE * z)


@jax.jit
def conv_block(x_nchw, w_oihw, bias, gamma, beta):
    """Forward pass of ConvBlock. x_nchw: (N, Cin, H, W) float32."""
    del bias  # exactly cancelled by training-mode BatchNorm (mean subtraction)

    # --- glue: NCHW -> NHWC, pad, flatten padded rows, 3 H-shifted copies ---
    x = jnp.transpose(x_nchw, (0, 2, 3, 1))                      # (N, H, W, CIN)
    xp = jnp.pad(x, ((0, 0), (PAD, PAD), (PAD, PAD), (0, 0)))    # (N, H+2, W+2, CIN)
    rows = xp.reshape(N, WP, ROWK)                               # (N, 18, 72)
    lhs = jnp.concatenate([rows[:, kh:kh + H, :] for kh in range(KH)], axis=-1)
    lhs = lhs.reshape(NH, KTOT).astype(jnp.bfloat16)             # (32, 216)

    # Banded conv weight: M[kh*ROWK + j*CIN + cin, w*COUT + cout]
    #   = W[cout, cin, kh, kw]  where j == w + kw  (kw unrolled into the band).
    w_hwio = jnp.transpose(w_oihw, (2, 3, 1, 0))                 # (KH, KW, CIN, COUT)
    j_eq = (jnp.arange(WP)[None, :, None] ==
            (jnp.arange(W)[None, None, :] + jnp.arange(KW)[:, None, None])
            ).astype(jnp.float32)                                 # (KW, 18, W) 0/1
    m = jnp.einsum('hkcn,kjw->hjcwn', w_hwio, j_eq)              # (KH, 18, CIN, W, COUT)
    m = m.reshape(KTOT, LANES).astype(jnp.bfloat16)              # (216, 128)

    # One-hot channel selector: sel[c, l] = 1 iff l % COUT == c.
    sel = (jnp.arange(LANES)[None, :] % COUT ==
           jnp.arange(COUT)[:, None]).astype(jnp.float32)        # (8, 128)

    out2d = pl.pallas_call(
        convblock_kernel,
        out_shape=jax.ShapeDtypeStruct((NH, LANES), jnp.float32),
        in_specs=[pl.BlockSpec(memory_space=pltpu.MemorySpace.VMEM)] * 5,
        out_specs=pl.BlockSpec(memory_space=pltpu.MemorySpace.VMEM),
    )(lhs, m, sel,
      gamma.reshape(COUT, 1).astype(jnp.float32),
      beta.reshape(COUT, 1).astype(jnp.float32))

    # (N*H, W*COUT) row-major == NHWC flattened; back to NCHW.
    out_nhwc = out2d.reshape(N, H, W, COUT)
    return jnp.transpose(out_nhwc, (0, 3, 1, 2))


def reference(x_nchw, w_oihw, bias, gamma, beta):
    """Pure-JAX f32 reference matching PyTorch semantics (training-mode BN)."""
    y = jax.lax.conv_general_dilated(
        x_nchw, w_oihw, window_strides=(STRIDE, STRIDE),
        padding=((PAD, PAD), (PAD, PAD)),
        dimension_numbers=("NCHW", "OIHW", "NCHW"),
        precision=jax.lax.Precision.HIGHEST)
    y = y + bias.reshape(1, COUT, 1, 1)
    mean = jnp.mean(y, axis=(0, 2, 3), keepdims=True)
    var = jnp.mean((y - mean) ** 2, axis=(0, 2, 3), keepdims=True)
    z = (y - mean) / jnp.sqrt(var + EPS)
    z = z * gamma.reshape(1, COUT, 1, 1) + beta.reshape(1, COUT, 1, 1)
    return jnp.where(z >= 0, z, NEG_SLOPE * z)


if __name__ == "__main__":
    key = jax.random.PRNGKey(0)
    kx, kwt, kb = jax.random.split(key, 3)

    # Deterministic parameter init (shapes per the module's __init__):
    #   Conv2d(4, 8, 3, 1, 1): weight (8, 4, 3, 3), bias (8,)
    #   BatchNorm2d(8): gamma = ones(8), beta = zeros(8)  (PyTorch defaults)
    fan_in = CIN * KH * KW
    bound = 1.0 / (fan_in ** 0.5)
    w = jax.random.uniform(kwt, (COUT, CIN, KH, KW), jnp.float32, -bound, bound)
    b = jax.random.uniform(kb, (COUT,), jnp.float32, -bound, bound)
    gamma = jnp.ones((COUT,), jnp.float32)
    beta = jnp.zeros((COUT,), jnp.float32)

    x = jax.random.normal(kx, (N, CIN, H, W), jnp.float32)

    out = jax.block_until_ready(conv_block(x, w, b, gamma, beta))
    ref = jax.block_until_ready(reference(x, w, b, gamma, beta))

    assert out.shape == (N, COUT, H, W)
    # Tolerance reflects the single-pass bf16 MXU conv (f32 accumulate) vs. the
    # f32 HIGHEST reference; observed error is ~1e-3..1e-2 after BN scaling.
    err = jnp.max(jnp.abs(out - ref))
    assert jnp.allclose(out, ref, atol=2e-2, rtol=2e-2), f"max abs err {err}"
    print("KERNEL_OK")
</pallas_src>

<mosaic_0001>
module attributes {stable_mosaic.version = 11 : i64} {
  func.func @convblock_kernel(%arg0: memref<32x216xbf16, #tpu.memory_space<vmem>>, %arg1: memref<216x128xbf16, #tpu.memory_space<vmem>>, %arg2: memref<8x128xf32, #tpu.memory_space<vmem>>, %arg3: memref<8x1xf32, #tpu.memory_space<vmem>>, %arg4: memref<8x1xf32, #tpu.memory_space<vmem>>, %arg5: memref<32x128xf32, #tpu.memory_space<vmem>>) attributes {dimension_semantics = [], scalar_prefetch = 0 : i64, scratch_operands = 0 : i64, tpu.core_type = #tpu.core_type<tc>} {
    %c0 = arith.constant 0 : index
    %c0_0 = arith.constant 0 : index
    %0 = vector.load %arg0[%c0, %c0_0] : memref<32x216xbf16, #tpu.memory_space<vmem>>, vector<32x216xbf16>
    %c0_1 = arith.constant 0 : index
    %c0_2 = arith.constant 0 : index
    %1 = vector.load %arg1[%c0_1, %c0_2] : memref<216x128xbf16, #tpu.memory_space<vmem>>, vector<216x128xbf16>
    %cst = arith.constant dense<0.000000e+00> : vector<32x128xf32>
    %2 = tpu.matmul %0, %1, %cst {dimension_numbers = #tpu.dot_dimension_numbers<[1], [0], [0], [1], [0, 0, 1, 1], [], []>} : vector<32x216xbf16>, vector<216x128xbf16>, vector<32x128xf32> -> vector<32x128xf32>
    %c0_3 = arith.constant 0 : index
    %c0_4 = arith.constant 0 : index
    %3 = vector.load %arg2[%c0_3, %c0_4] : memref<8x128xf32, #tpu.memory_space<vmem>>, vector<8x128xf32>
    %cst_5 = arith.constant dense<0.000000e+00> : vector<128xf32>
    %4 = vector.multi_reduction <add>, %2, %cst_5 [0] : vector<32x128xf32> to vector<128xf32>
    %5 = vector.shape_cast %4 : vector<128xf32> to vector<1x128xf32>
    %6 = arith.mulf %2, %2 : vector<32x128xf32>
    %cst_6 = arith.constant dense<0.000000e+00> : vector<128xf32>
    %7 = vector.multi_reduction <add>, %6, %cst_6 [0] : vector<32x128xf32> to vector<128xf32>
    %8 = vector.shape_cast %7 : vector<128xf32> to vector<1x128xf32>
    %9 = vector.broadcast %5 : vector<1x128xf32> to vector<8x128xf32>
    %10 = arith.mulf %3, %9 : vector<8x128xf32>
    %cst_7 = arith.constant dense<0.000000e+00> : vector<8xf32>
    %11 = vector.multi_reduction <add>, %10, %cst_7 [1] : vector<8x128xf32> to vector<8xf32>
    %12 = vector.shape_cast %11 : vector<8xf32> to vector<8x1xf32>
    %13 = vector.broadcast %8 : vector<1x128xf32> to vector<8x128xf32>
    %14 = arith.mulf %3, %13 : vector<8x128xf32>
    %cst_8 = arith.constant dense<0.000000e+00> : vector<8xf32>
    %15 = vector.multi_reduction <add>, %14, %cst_8 [1] : vector<8x128xf32> to vector<8xf32>
    %16 = vector.shape_cast %15 : vector<8xf32> to vector<8x1xf32>
    %cst_9 = arith.constant 0.001953125 : f32
    %17 = vector.broadcast %cst_9 : f32 to vector<8x1xf32>
    %18 = arith.mulf %12, %17 : vector<8x1xf32>
    %cst_10 = arith.constant 0.001953125 : f32
    %19 = vector.broadcast %cst_10 : f32 to vector<8x1xf32>
    %20 = arith.mulf %16, %19 : vector<8x1xf32>
    %21 = arith.mulf %18, %18 : vector<8x1xf32>
    %22 = arith.subf %20, %21 : vector<8x1xf32>
    %c0_11 = arith.constant 0 : index
    %c0_12 = arith.constant 0 : index
    %23 = vector.load %arg3[%c0_11, %c0_12] : memref<8x1xf32, #tpu.memory_space<vmem>>, vector<8x1xf32>
    %cst_13 = arith.constant 9.99999974E-6 : f32
    %24 = vector.broadcast %cst_13 : f32 to vector<8x1xf32>
    %25 = arith.addf %22, %24 : vector<8x1xf32>
    %26 = math.rsqrt %25 : vector<8x1xf32>
    %27 = arith.mulf %23, %26 : vector<8x1xf32>
    %c0_14 = arith.constant 0 : index
    %c0_15 = arith.constant 0 : index
    %28 = vector.load %arg4[%c0_14, %c0_15] : memref<8x1xf32, #tpu.memory_space<vmem>>, vector<8x1xf32>
    %29 = arith.mulf %18, %27 : vector<8x1xf32>
    %30 = arith.subf %28, %29 : vector<8x1xf32>
    %31 = vector.broadcast %27 : vector<8x1xf32> to vector<8x128xf32>
    %32 = arith.mulf %3, %31 : vector<8x128xf32>
    %cst_16 = arith.constant dense<0.000000e+00> : vector<128xf32>
    %33 = vector.multi_reduction <add>, %32, %cst_16 [0] : vector<8x128xf32> to vector<128xf32>
    %34 = vector.shape_cast %33 : vector<128xf32> to vector<1x128xf32>
    %35 = vector.broadcast %30 : vector<8x1xf32> to vector<8x128xf32>
    %36 = arith.mulf %3, %35 : vector<8x128xf32>
    %cst_17 = arith.constant dense<0.000000e+00> : vector<128xf32>
    %37 = vector.multi_reduction <add>, %36, %cst_17 [0] : vector<8x128xf32> to vector<128xf32>
    %38 = vector.shape_cast %37 : vector<128xf32> to vector<1x128xf32>
    %39 = vector.broadcast %34 : vector<1x128xf32> to vector<32x128xf32>
    %40 = arith.mulf %2, %39 : vector<32x128xf32>
    %41 = vector.broadcast %38 : vector<1x128xf32> to vector<32x128xf32>
    %42 = arith.addf %40, %41 : vector<32x128xf32>
    %cst_18 = arith.constant 0.000000e+00 : f32
    %43 = vector.broadcast %cst_18 : f32 to vector<32x128xf32>
    %44 = arith.cmpf oge, %42, %43 : vector<32x128xf32>
    %cst_19 = arith.constant 0.00999999977 : f32
    %45 = vector.broadcast %cst_19 : f32 to vector<32x128xf32>
    %46 = arith.mulf %45, %42 : vector<32x128xf32>
    %47 = arith.select %44, %42, %46 : vector<32x128xi1>, vector<32x128xf32>
    %c0_20 = arith.constant 0 : index
    %c0_21 = arith.constant 0 : index
    %48 = vector.load %arg5[%c0_20, %c0_21] : memref<32x128xf32, #tpu.memory_space<vmem>>, vector<32x128xf32>
    tpu.vector_store %arg5[%c0_20, %c0_21], %47 {strides = array<i32>} : memref<32x128xf32, #tpu.memory_space<vmem>>, vector<32x128xf32>,
    return
  }
}

</mosaic_0001>

<llo_original>
// kernel: conv_block.1
$region0: #{conv_block.1}
  #allocation0 [shape = 'u32[]', space=smem, size = 0x4, offset = 0x4, fixed_abs, tag = 'smem constant byte address 0x4 - core index']
  #allocation1 [shape = 'u32[72,128]{1,0:T(1,128)}', space=vmem, size = 0x9000, scoped, tag = 'internal scratch']
  %s0 = inlined_call_operand.vmem [shape: bf16[32,216], index: 0, kind: input, shape index: {}]
  %s1 = inlined_call_operand.vmem [shape: bf16[216,128], index: 1, kind: input, shape index: {}]
  %s2 = inlined_call_operand.vmem [shape: f32[8,128], index: 2, kind: input, shape index: {}]
  %s3 = inlined_call_operand.vmem [shape: f32[8,1], index: 3, kind: input, shape index: {}]
  %s4 = inlined_call_operand.vmem [shape: f32[8,1], index: 4, kind: input, shape index: {}]
  %s5 = inlined_call_operand.vmem [shape: f32[32,128], index: 5, kind: output, shape index: {}]
  %s6 = sld [smem:[#allocation0]]
  $region30: #{conv_block.1} parent=0
    _
  %s8 = ssub.s32 1, %s6
  %s9 = scalar_select 0, %s8, %s6
  // Predicated region
  $region2: #{conv_block.1} parent=0 // pred_check
    _
  $region3: #{conv_block.1} parent=0 // pred_check_branch
    %11 = sbr.rel (0) target = $region5
  $region4: #{conv_block.1} parent=0 // pred_region
    _
  $region5: #{conv_block.1} parent=0 // pred_fallthru
    _
  // Predicated region
  $region6: #{conv_block.1} parent=0 // pred_check
    _
  $region7: #{conv_block.1} parent=0 // pred_check_branch
    %13 = sbr.rel (0) target = $region9
  $region8: #{conv_block.1} parent=0 // pred_region
    _
  $region9: #{conv_block.1} parent=0 // pred_fallthru
    _
  // Predicated region
  $region10: #{conv_block.1} parent=0 // pred_check
    _
  $region11: #{conv_block.1} parent=0 // pred_check_branch
    %15 = sbr.rel (0) target = $region13
  $region12: #{conv_block.1} parent=0 // pred_region
    _
  $region13: #{conv_block.1} parent=0 // pred_fallthru
    _
  // Predicated region
  $region14: #{conv_block.1} parent=0 // pred_check
    _
  $region15: #{conv_block.1} parent=0 // pred_check_branch
    %17 = sbr.rel (0) target = $region17
  $region16: #{conv_block.1} parent=0 // pred_region
    _
  $region17: #{conv_block.1} parent=0 // pred_fallthru
    _
  // Predicated region
  $region18: #{conv_block.1} parent=0 // pred_check
    _
  $region19: #{conv_block.1} parent=0 // pred_check_branch
    %19 = sbr.rel (0) target = $region21
  $region20: #{conv_block.1} parent=0 // pred_region
    _
  $region21: #{conv_block.1} parent=0 // pred_fallthru
    _
  %v21 = vld [vmem:[%s0] sm:$0xff]
  %v22 = vld [vmem:[%s0 + $0x8] sm:$0xff]
  %v23 = vld [vmem:[%s0 + $0x10] sm:$0xff]
  %v24 = vld [vmem:[%s0 + $0x18] sm:$0xff]
  %v25 = vld [vmem:[%s1] sm:$0xf]
  %v26 = vld [vmem:[%s1 + $0x4] sm:$0xf]
  %v27 = vld [vmem:[%s1 + $0x8] sm:$0xf]
  %v28 = vld [vmem:[%s1 + $0xc] sm:$0xf]
  %v29 = vld [vmem:[%s1 + $0x10] sm:$0xf]
  %v30 = vld [vmem:[%s1 + $0x14] sm:$0xf]
  %v31 = vld [vmem:[%s1 + $0x18] sm:$0xf]
  %v32 = vld [vmem:[%s1 + $0x1c] sm:$0xf]
  %v33 = vld [vmem:[%s1 + $0x20] sm:$0xf]
  %v34 = vld [vmem:[%s1 + $0x24] sm:$0xf]
  %v35 = vld [vmem:[%s1 + $0x28] sm:$0xf]
  %v36 = vld [vmem:[%s1 + $0x2c] sm:$0xf]
  %v37 = vld [vmem:[%s1 + $0x30] sm:$0xf]
  %v38 = vld [vmem:[%s1 + $0x34] sm:$0xf]
  %v39 = vld [vmem:[%s1 + $0x38] sm:$0xf]
  %v40 = vld [vmem:[%s1 + $0x3c] sm:$0xf]
  %v41 = vld [vmem:[%s1 + $0x40] sm:$0xf]
  %v42 = vld [vmem:[%s1 + $0x44] sm:$0xf]
  %v43 = vld [vmem:[%s1 + $0x48] sm:$0xf]
  %v44 = vld [vmem:[%s1 + $0x4c] sm:$0xf]
  %v45 = vld [vmem:[%s1 + $0x50] sm:$0xf]
  %v46 = vld [vmem:[%s1 + $0x54] sm:$0xf]
  %v47 = vld [vmem:[%s1 + $0x58] sm:$0xf]
  %v48 = vld [vmem:[%s1 + $0x5c] sm:$0xf]
  %v49 = vld [vmem:[%s1 + $0x60] sm:$0xf]
  %v50 = vld [vmem:[%s1 + $0x64] sm:$0xf]
  %v51 = vld [vmem:[%s1 + $0x68] sm:$0xf]
  %v56 = vunpack.c.l.b16 %v21
  %v57 = vunpack.c.h.b16 %v21
  %v58 = vunpack.c.l.b16 %v22
  %v59 = vunpack.c.h.b16 %v22
  %v60 = vunpack.c.l.b16 %v23
  %v61 = vunpack.c.h.b16 %v23
  %v62 = vunpack.c.l.b16 %v24
  %v63 = vunpack.c.h.b16 %v24
  %v64 = vpack.c.b16 %v58, %v56
  %v65 = vpack.c.b16 %v59, %v57
  %v66 = vpack.c.b16 %v62, %v60
  %v67 = vpack.c.b16 %v63, %v61
  %v97 = vunpack.c.l.b16 %v25
  %v98 = vunpack.c.l.b16 %v26
  %v99 = vunpack.c.l.b16 %v27
  %v100 = vunpack.c.l.b16 %v28
  %v101 = vunpack.c.l.b16 %v29
  %v102 = vunpack.c.l.b16 %v30
  %v103 = vunpack.c.l.b16 %v31
  %v104 = vunpack.c.l.b16 %v32
  %v105 = vunpack.c.l.b16 %v33
  %v106 = vunpack.c.l.b16 %v34
  %v107 = vunpack.c.l.b16 %v35
  %v108 = vunpack.c.l.b16 %v36
  %v109 = vunpack.c.l.b16 %v37
  %v110 = vunpack.c.l.b16 %v38
  %v111 = vunpack.c.l.b16 %v39
  %v112 = vunpack.c.l.b16 %v40
  %v113 = vunpack.c.l.b16 %v41
  %v114 = vunpack.c.l.b16 %v42
  %v115 = vunpack.c.l.b16 %v43
  %v116 = vunpack.c.l.b16 %v44
  %v117 = vunpack.c.l.b16 %v45
  %v118 = vunpack.c.l.b16 %v46
  %v119 = vunpack.c.l.b16 %v47
  %v120 = vunpack.c.l.b16 %v48
  %v121 = vunpack.c.l.b16 %v49
  %v122 = vunpack.c.l.b16 %v50
  %v123 = vunpack.c.l.b16 %v51
  %v124 = vpack.c.b16 %v98, %v97
  %v125 = vpack.c.b16 %v100, %v99
  %v126 = vpack.c.b16 %v102, %v101
  %v127 = vpack.c.b16 %v104, %v103
  %v128 = vpack.c.b16 %v106, %v105
  %v129 = vpack.c.b16 %v108, %v107
  %v130 = vpack.c.b16 %v110, %v109
  %v131 = vpack.c.b16 %v112, %v111
  %v132 = vpack.c.b16 %v114, %v113
  %v133 = vpack.c.b16 %v116, %v115
  %v134 = vpack.c.b16 %v118, %v117
  %v135 = vpack.c.b16 %v120, %v119
  %v136 = vpack.c.b16 %v122, %v121
  %v137 = vpack.c.b16 %v123, %v123
  %vm151 = vcmask 719872
  %v153 = vsel %vm151, %v65, 0
  %v156 = vsel %vm151, %v67, 0
  %vm158 = vcmask 1043456
  %v160 = vsel %vm158, %v137, 0
  %162 = vmatpush.bf16.msra.mxu0 %v131
  %163 = vmatpush.bf16.msra.mxu0 %v130
  %164 = vmatpush.bf16.msra.mxu0 %v129
  %165 = vmatpush.bf16.msra.mxu0 %v128
  %166 = vmatpush.bf16.msra.mxu0 %v127
  %167 = vmatpush.bf16.msra.mxu0 %v126
  %168 = vmatpush.bf16.msra.mxu0 %v125
  %169 = vmatpush.bf16.msra.mxu0 %v124
  %170 = vmatmul.bf16.gmra.mxu0 %v64
  %v171 = vpop.f32.mrf.mxu0
  %v172 = vadd.f32 0.0, %v171
  %v173 = vpop.f32.mrf.mxu0
  %v174 = vadd.f32 0.0, %v173
  %175 = vmatmul.bf16.gmra.mxu0 %v66
  %v176 = vpop.f32.mrf.mxu0
  %v177 = vadd.f32 0.0, %v176
  %v178 = vpop.f32.mrf.mxu0
  %v179 = vadd.f32 0.0, %v178
  %180 = vdwg.mxu0
  %181 = vmatpush.bf16.msra.mxu0 0
  %182 = vmatpush.bf16.msra.mxu0 0
  %183 = vmatpush.bf16.msra.mxu0 %v160
  %184 = vmatpush.bf16.msra.mxu0 %v136
  %185 = vmatpush.bf16.msra.mxu0 %v135
  %186 = vmatpush.bf16.msra.mxu0 %v134
  %187 = vmatpush.bf16.msra.mxu0 %v133
  %188 = vmatpush.bf16.msra.mxu0 %v132
  %189 = vmatmul.bf16.gmra.mxu0 %v153
  %v190 = vpop.f32.mrf.mxu0
  %v191 = vadd.f32 %v172, %v190
  %v192 = vpop.f32.mrf.mxu0
  %v193 = vadd.f32 %v174, %v192
  %194 = vmatmul.bf16.gmra.mxu0 %v156
  %v195 = vpop.f32.mrf.mxu0
  %v196 = vadd.f32 %v177, %v195
  %v197 = vpop.f32.mrf.mxu0
  %v198 = vadd.f32 %v179, %v197
  %199 = vdwg.mxu0
  %v200 = vld [vmem:[%s2] sm:$0xff]
  %v201 = vadd.f32 %v191, %v193
  %v202 = vadd.f32 %v201, %v196
  %v203 = vadd.f32 %v202, %v198
  %v204 = vrot.slane %v203, 4
  %v205 = vadd.f32 %v203, %v204
  %v206 = vrot.slane %v205, 2
  %v207 = vadd.f32 %v205, %v206
  %v208 = vrot.slane %v207, 1
  %v209 = vadd.f32 %v207, %v208
  %v210 = vmul.f32 %v191, %v191
  %v211 = vmul.f32 %v193, %v193
  %v212 = vmul.f32 %v196, %v196
  %v213 = vmul.f32 %v198, %v198
  %v214 = vadd.f32 %v210, %v211
  %v215 = vadd.f32 %v214, %v212
  %v216 = vadd.f32 %v215, %v213
  %v217 = vrot.slane %v216, 4
  %v218 = vadd.f32 %v216, %v217
  %v219 = vrot.slane %v218, 2
  %v220 = vadd.f32 %v218, %v219
  %v221 = vrot.slane %v220, 1
  %v222 = vadd.f32 %v220, %v221
  %v223 = vmul.f32 %v200, %v209
  %224 = vadd.xlane.f32.xlu0 %v223
  %v225 = vpop.xlane.xlu0 %224
  %v226 = vmul.f32 %v200, %v222
  %227 = vadd.xlane.f32.xlu0 %v226
  %v228 = vpop.xlane.xlu0 %227
  %v229 = vmul.f32 %v225, 0.001953125
  %v230 = vmul.f32 %v228, 0.001953125
  %v231 = vmul.f32 %v229, %v229
  %v232 = vsub.f32 %v230, %v231
  %v233 = vld [vmem:[%s3] sm:$0xff]
  %v234 = vadd.f32 %v232, 1e-05
  %v235 = vrsqrt.pop %v234
  %v236 = vmul.f32 %v235, %v234
  %v237 = vmul.f32 %v236, %v235
  %v238 = vmul.f32 0.5, %v237
  %v239 = vsub.f32 1.5, %v238
  %v240 = vmul.f32 %v235, %v239
  %vm241 = vweird.f32 %v234
  %vm242 = vweird.f32 %v235
  %vm243 = vmor %vm241, %vm242
  %v244 = vsel %vm243, %v235, %v240
  %v245 = vmul.f32 %v233, %v244
  %v246 = vld [vmem:[%s4] sm:$0xff]
  %v247 = vmul.f32 %v229, %v245
  %v248 = vsub.f32 %v246, %v247
  %250 = vset.pattern.permute.xlu0 0
  %251 = vperm.xlu0 %250, %v245
  %v252 = vpop.permute.xlu0 %251
  %v254 = vmul.f32 %v200, %v252
  %v255 = vrot.slane %v254, 4
  %v256 = vadd.f32 %v254, %v255
  %v257 = vrot.slane %v256, 2
  %v258 = vadd.f32 %v256, %v257
  %v259 = vrot.slane %v258, 1
  %v260 = vadd.f32 %v258, %v259
  %262 = vset.pattern.permute.xlu0 0
  %263 = vperm.xlu0 %262, %v248
  %v264 = vpop.permute.xlu0 %263
  %v266 = vmul.f32 %v200, %v264
  %v267 = vrot.slane %v266, 4
  %v268 = vadd.f32 %v266, %v267
  %v269 = vrot.slane %v268, 2
  %v270 = vadd.f32 %v268, %v269
  %v271 = vrot.slane %v270, 1
  %v272 = vadd.f32 %v270, %v271
  %v273 = vmul.f32 %v191, %v260
  %v274 = vmul.f32 %v193, %v260
  %v275 = vmul.f32 %v196, %v260
  %v276 = vmul.f32 %v198, %v260
  %v277 = vadd.f32 %v273, %v272
  %v278 = vadd.f32 %v274, %v272
  %v279 = vadd.f32 %v275, %v272
  %v280 = vadd.f32 %v276, %v272
  %vm281 = vcmp.ge.f32.partialorder %v277, 0.0
  %vm282 = vcmp.ge.f32.partialorder %v278, 0.0
  %vm283 = vcmp.ge.f32.partialorder %v279, 0.0
  %vm284 = vcmp.ge.f32.partialorder %v280, 0.0
  %v285 = vmul.f32 %v277, 0.01
  %v286 = vmul.f32 %v278, 0.01
  %v287 = vmul.f32 %v279, 0.01
  %v288 = vmul.f32 %v280, 0.01
  %v289 = vsel %vm281, %v277, %v285
  %v290 = vsel %vm282, %v278, %v286
  %v291 = vsel %vm283, %v279, %v287
  %v292 = vsel %vm284, %v280, %v288
  %293 = vst [vmem:[%s5] sm:$0xff] %v289
  %294 = vst [vmem:[%s5 + $0x8] sm:$0xff] %v290
  %295 = vst [vmem:[%s5 + $0x10] sm:$0xff] %v291
  %296 = vst [vmem:[%s5 + $0x18] sm:$0xff] %v292
  // Predicated region
  $region22: #{conv_block.1} parent=0 // pred_check
    _
  $region23: #{conv_block.1} parent=0 // pred_check_branch
    %298 = sbr.rel (0) target = $region25
  $region24: #{conv_block.1} parent=0 // pred_region
    _
  $region25: #{conv_block.1} parent=0 // pred_fallthru
    _
  // Predicated region
  $region26: #{conv_block.1} parent=0 // pred_check
    _
  $region27: #{conv_block.1} parent=0 // pred_check_branch
    %300 = sbr.rel (0) target = $region29
  $region28: #{conv_block.1} parent=0 // pred_region
    _
  $region29: #{conv_block.1} parent=0 // pred_fallthru
    _

</llo_original>
